<compile_context>
chip_gen: v6e
topology: v6e:2x2x1
jax: 0.10.0
libtpu: 0.0.40
codegen_flags: <defaults>
</compile_context>

<pallas_src>
import functools

import jax
import jax.numpy as jnp
from jax.experimental import pallas as pl
from jax.experimental.pallas import tpu as pltpu


def _round_up(a: int, m: int) -> int:
    return ((a + m - 1) // m) * m


def _cdiv(a: int, b: int) -> int:
    return (a + b - 1) // b


def _vmem_budget_bytes() -> int:
    """Per-generation VMEM budget with ~25% headroom for compiler scratch."""
    try:
        phys = int(pltpu.get_tpu_info().vmem_capacity_bytes)
    except Exception:
        phys = 64 << 20  # conservative fallback (v7x physical VMEM)
    return max((phys * 3) // 4, 16 << 20)


# ---------------------------------------------------------------------------
# Kernels
# ---------------------------------------------------------------------------
def _kernel_fused(x_ref, wt_ref, b_ref, o_ref):
    # x_ref: (TM, K), wt_ref: (K, TN) pre-transposed, b_ref: (1, TN) f32
    y = jnp.dot(x_ref[...], wt_ref[...], preferred_element_type=jnp.float32)
    y = y + b_ref[...]
    o_ref[...] = jnp.maximum(y, 0.2 * y).astype(o_ref.dtype)  # LeakyReLU(0.2)


def _kernel_ktiled(x_ref, wt_ref, b_ref, o_ref, acc_ref):
    # Grid = (M tiles, N tiles, K tiles); K is innermost / "arbitrary".
    k = pl.program_id(2)

    @pl.when(k == 0)
    def _():
        acc_ref[...] = jnp.zeros_like(acc_ref)

    acc_ref[...] += jnp.dot(x_ref[...], wt_ref[...],
                            preferred_element_type=jnp.float32)

    @pl.when(k == pl.num_programs(2) - 1)
    def _():
        y = acc_ref[...] + b_ref[...]
        o_ref[...] = jnp.maximum(y, 0.2 * y).astype(o_ref.dtype)


# ---------------------------------------------------------------------------
# Parameter preparation (hoisted out of the per-call path)
# ---------------------------------------------------------------------------
def prepare_fclayer_params(w, b, matmul_dtype=jnp.float32, pad_k_to=None):
    """w: (nodes, innodes) PyTorch layout, b: (nodes,).
    Returns (w_t: (K[, padded to pad_k_to], nodes) in matmul_dtype,
             b2d: (1, nodes) f32).  Call once per layer; reuse the result.
    On v5e, matmul_dtype=jnp.bfloat16 is the recommended default (halves W/x
    DMA bytes and matches the native MXU rate; accumulation stays f32)."""
    w_t = jnp.asarray(w).T.astype(matmul_dtype)
    if pad_k_to is not None and (w_t.shape[0] % pad_k_to) != 0:
        pad = pad_k_to - (w_t.shape[0] % pad_k_to)
        w_t = jnp.pad(w_t, ((0, pad), (0, 0)))
    b2d = jnp.asarray(b).reshape(1, -1).astype(jnp.float32)
    return w_t, b2d


# ---------------------------------------------------------------------------
# Forward
# ---------------------------------------------------------------------------
@functools.partial(jax.jit, static_argnames=("block_m", "block_n", "block_k"))
def fclayer_forward(x, w_t, b2d, *, block_m=512, block_n=512, block_k=None):
    """leaky_relu(x @ W.T + b, 0.2) with W pre-transposed as w_t (K, N)."""
    batch, k_in = x.shape
    k_w, nodes = w_t.shape
    out_dtype = x.dtype
    matmul_dtype = w_t.dtype
    in_elt = jnp.dtype(matmul_dtype).itemsize
    out_elt = jnp.dtype(out_dtype).itemsize

    x_c = x.astype(matmul_dtype) if x.dtype != matmul_dtype else x
    if k_w > k_in:  # weights were pre-padded along K in prepare_fclayer_params
        x_c = jnp.pad(x_c, ((0, 0), (0, k_w - k_in)))
    K = k_w

    # ---- tile selection --------------------------------------------------
    sub = 16 if matmul_dtype == jnp.bfloat16 else 8   # native sublane packing
    tm = block_m if batch >= block_m else _round_up(batch, sub)
    tn = block_n if nodes >= block_n else _round_up(nodes, 128)

    budget = _vmem_budget_bytes()

    def needed(tm_, tn_, kb_, k_tiled_):
        # double-buffered x/W^T/bias/output tiles (+ single f32 accumulator)
        nb = 2 * (tm_ * kb_ + kb_ * tn_) * in_elt + 2 * tn_ * 4
        nb += 2 * tm_ * tn_ * out_elt
        if k_tiled_:
            nb += tm_ * tn_ * 4
        return nb

    k_tiled = block_k is not None and K > block_k
    kb = _round_up(min(block_k, K), 128) if k_tiled else K

    # Shrink tiles / engage K-tiling until the working set fits the budget.
    while needed(tm, tn, kb, k_tiled) > budget:
        if not k_tiled and K > 2048:
            k_tiled, kb = True, 2048
        elif k_tiled and kb > 128:
            kb = max(_round_up(kb // 2, 128), 128)
        elif tm >= tn and tm > 256:
            tm = max(_round_up(tm // 2, sub), sub)
        elif tn > 256:
            tn = max(_round_up(tn // 2, 128), 128)
        elif not k_tiled and K > 512:
            k_tiled, kb = True, 512
        else:
            break

    nm = _cdiv(batch, tm)
    nn = _cdiv(nodes, tn)

    # v7x has 2 TensorCores/chip: a 1x1 grid leaves half the chip idle.
    if nm == 1 and nn == 1 and nodes >= 256:
        tn = max(_round_up(_cdiv(nodes, 2), 128), 128)
        nn = _cdiv(nodes, tn)

    # K edge blocks of a reduction must be real zeros (not garbage), so pad K.
    if k_tiled:
        pad_k = _round_up(K, kb)
        if pad_k != K:
            # TODO(synk): for steady-state deep layers pre-pad K once via
            # prepare_fclayer_params(..., pad_k_to=block_k) to avoid this pass.
            x_c = jnp.pad(x_c, ((0, 0), (0, pad_k - K)))
            w_t = jnp.pad(w_t, ((0, pad_k - K), (0, 0)))
        nk = pad_k // kb
    else:
        nk = 1

    vmem_limit = int(min(budget, max(needed(tm, tn, kb, k_tiled) + (4 << 20),
                                     8 << 20)))

    cost = pl.CostEstimate(
        flops=2 * batch * nodes * k_in,
        transcendentals=0,
        bytes_accessed=(batch * K + K * nodes) * in_elt
        + nodes * 4 + batch * nodes * out_elt,
    )

    if k_tiled:
        grid = (nm, nn, nk)
        in_specs = [
            pl.BlockSpec((tm, kb), lambda i, j, k: (i, k)),    # x tile
            pl.BlockSpec((kb, tn), lambda i, j, k: (k, j)),    # W^T tile
            pl.BlockSpec((1, tn), lambda i, j, k: (0, j)),     # bias slice
        ]
        out_specs = pl.BlockSpec((tm, tn), lambda i, j, k: (i, j))
        scratch = [pltpu.VMEM((tm, tn), jnp.float32)]
        semantics = ("parallel", "parallel", "arbitrary")
        kernel = _kernel_ktiled
    else:
        # Pick grid order by operand reuse: hold whichever operand would be
        # more expensive to re-stream from HBM across the inner loop.
        x_bytes = batch * K * in_elt
        w_bytes = K * nodes * in_elt
        m_outer = (x_bytes + nm * w_bytes) <= (nn * x_bytes + w_bytes)
        kernel = _kernel_fused
        scratch = []
        semantics = ("parallel", "parallel")
        if m_outer:   # x held across the inner N loop, W^T streamed
            grid = (nm, nn)
            in_specs = [
                pl.BlockSpec((tm, K), lambda i, j: (i, 0)),
                pl.BlockSpec((K, tn), lambda i, j: (0, j)),
                pl.BlockSpec((1, tn), lambda i, j: (0, j)),
            ]
            out_specs = pl.BlockSpec((tm, tn), lambda i, j: (i, j))
        else:         # W^T held across the inner M loop, x streamed
            grid = (nn, nm)
            in_specs = [
                pl.BlockSpec((tm, K), lambda j, i: (i, 0)),
                pl.BlockSpec((K, tn), lambda j, i: (0, j)),
                pl.BlockSpec((1, tn), lambda j, i: (0, j)),
            ]
            out_specs = pl.BlockSpec((tm, tn), lambda j, i: (i, j))

    return pl.pallas_call(
        kernel,
        out_shape=jax.ShapeDtypeStruct((batch, nodes), out_dtype),
        grid_spec=pltpu.PrefetchScalarGridSpec(
            num_scalar_prefetch=0,
            grid=grid,
            in_specs=in_specs,
            out_specs=out_specs,
            scratch_shapes=scratch,
        ),
        compiler_params=pltpu.CompilerParams(
            dimension_semantics=semantics,
            vmem_limit_bytes=vmem_limit,
        ),
        cost_estimate=cost,
    )(x_c, w_t, b2d)


# ---------------------------------------------------------------------------
# Reference / init helpers
# ---------------------------------------------------------------------------
def init_fclayer_params(key, innodes, nodes, dtype=jnp.float32):
    # Deterministic init mimicking nn.Linear default (uniform +-1/sqrt(innodes))
    kw, kb = jax.random.split(key)
    bound = 1.0 / (innodes ** 0.5)
    w = jax.random.uniform(kw, (nodes, innodes), dtype, -bound, bound)
    b = jax.random.uniform(kb, (nodes,), dtype, -bound, bound)
    return w, b


def _ref_forward(x, w, b):
    y = x @ w.T + b
    return jnp.where(y >= 0, y, 0.2 * y)


if __name__ == "__main__":
    key = jax.random.PRNGKey(0)
    k1, k2, k3, k4 = jax.random.split(key, 4)

    # --- Test 1: tiny FClayer, f32 GEMM (tight check) ----------------------
    batch, innodes, nodes = 8, 32, 64
    x = jax.random.normal(k1, (batch, innodes), jnp.float32)
    w, b = init_fclayer_params(k2, innodes, nodes)
    w_t, b2d = prepare_fclayer_params(w, b, jnp.float32)
    out = fclayer_forward(x, w_t, b2d)
    jax.block_until_ready(out)
    ref = _ref_forward(x, w, b)
    assert out.shape == (batch, nodes)
    assert jnp.allclose(out, ref, atol=1e-5, rtol=1e-5)

    # --- Test 2: bf16 GEMM inputs (recommended on v5e), loose check --------
    w_t16, b2d16 = prepare_fclayer_params(w, b, jnp.bfloat16)
    out16 = fclayer_forward(x, w_t16, b2d16)
    jax.block_until_ready(out16)
    assert out16.shape == (batch, nodes)
    assert jnp.allclose(out16, ref, atol=1e-1, rtol=1e-1)

    # --- Test 3: force K-tiled accumulator path + ragged M/N/K edge blocks --
    batch3, innodes3, nodes3 = 10, 200, 96
    x3 = jax.random.normal(k3, (batch3, innodes3), jnp.float32)
    w3, b3 = init_fclayer_params(k4, innodes3, nodes3)
    w_t3, b2d3 = prepare_fclayer_params(w3, b3, jnp.float32)
    out3 = fclayer_forward(x3, w_t3, b2d3, block_k=128)
    jax.block_until_ready(out3)
    ref3 = _ref_forward(x3, w3, b3)
    assert out3.shape == (batch3, nodes3)
    assert jnp.allclose(out3, ref3, atol=1e-4, rtol=1e-4)

    print("KERNEL_OK")
</pallas_src>

<mosaic_0001>
module attributes {stable_mosaic.version = 11 : i64} {
  func.func @_kernel_fused(%arg0: i32, %arg1: i32, %arg2: memref<8x32xf32, #tpu.memory_space<vmem>>, %arg3: memref<32x128xf32, #tpu.memory_space<vmem>>, %arg4: memref<1x128xf32, #tpu.memory_space<vmem>>, %arg5: memref<8x128xf32, #tpu.memory_space<vmem>>) attributes {dimension_semantics = [#tpu.dimension_semantics<parallel>, #tpu.dimension_semantics<parallel>], iteration_bounds = array<i64: 1, 1>, scalar_prefetch = 0 : i64, scratch_operands = 0 : i64, tpu.core_type = #tpu.core_type<tc>, window_params = [{transform_indices = @transform_0, window_bounds = array<i64: 8, 32>}, {transform_indices = @transform_1, window_bounds = array<i64: 32, 128>}, {transform_indices = @transform_2, window_bounds = array<i64: 1, 128>}, {transform_indices = @transform_3, window_bounds = array<i64: 8, 128>}]} {
    %c0 = arith.constant 0 : index
    %c0_0 = arith.constant 0 : index
    %0 = vector.load %arg2[%c0, %c0_0] : memref<8x32xf32, #tpu.memory_space<vmem>>, vector<8x32xf32>
    %c0_1 = arith.constant 0 : index
    %c0_2 = arith.constant 0 : index
    %1 = vector.load %arg3[%c0_1, %c0_2] : memref<32x128xf32, #tpu.memory_space<vmem>>, vector<32x128xf32>
    %cst = arith.constant dense<0.000000e+00> : vector<8x128xf32>
    %2 = tpu.matmul %0, %1, %cst {dimension_numbers = #tpu.dot_dimension_numbers<[1], [0], [0], [1], [0, 0, 1, 1], [], []>} : vector<8x32xf32>, vector<32x128xf32>, vector<8x128xf32> -> vector<8x128xf32>
    %c0_3 = arith.constant 0 : index
    %c0_4 = arith.constant 0 : index
    %3 = vector.load %arg4[%c0_3, %c0_4] : memref<1x128xf32, #tpu.memory_space<vmem>>, vector<1x128xf32>
    %4 = vector.broadcast %3 : vector<1x128xf32> to vector<8x128xf32>
    %5 = arith.addf %2, %4 : vector<8x128xf32>
    %cst_5 = arith.constant 2.000000e-01 : f32
    %6 = vector.broadcast %cst_5 : f32 to vector<8x128xf32>
    %7 = arith.mulf %6, %5 : vector<8x128xf32>
    %8 = arith.maximumf %5, %7 : vector<8x128xf32>
    %c0_6 = arith.constant 0 : index
    %c0_7 = arith.constant 0 : index
    %9 = vector.load %arg5[%c0_6, %c0_7] : memref<8x128xf32, #tpu.memory_space<vmem>>, vector<8x128xf32>
    tpu.vector_store %arg5[%c0_6, %c0_7], %8 {strides = array<i32>} : memref<8x128xf32, #tpu.memory_space<vmem>>, vector<8x128xf32>,
    return
  }
  func.func @transform_0(%arg0: i32, %arg1: i32) -> (i32, i32) {
    %c0_i32 = arith.constant 0 : i32
    %c0_i32_0 = arith.constant 0 : i32
    return %arg0, %c0_i32 : i32, i32
  }
  func.func @transform_1(%arg0: i32, %arg1: i32) -> (i32, i32) {
    %c0_i32 = arith.constant 0 : i32
    %c0_i32_0 = arith.constant 0 : i32
    return %c0_i32, %arg1 : i32, i32
  }
  func.func @transform_2(%arg0: i32, %arg1: i32) -> (i32, i32) {
    %c0_i32 = arith.constant 0 : i32
    %c0_i32_0 = arith.constant 0 : i32
    return %c0_i32, %arg1 : i32, i32
  }
  func.func @transform_3(%arg0: i32, %arg1: i32) -> (i32, i32) {
    %c0_i32 = arith.constant 0 : i32
    return %arg0, %arg1 : i32, i32
  }
}

</mosaic_0001>

<llo_original>
// kernel: fclayer_forward.1
$region0: #{fclayer_forward.1}
  #allocation0 [shape = 'u32[]', space=smem, size = 0x4, offset = 0x4, fixed_abs, tag = 'smem constant byte address 0x4 - core index']
  #allocation1 [shape = 'u32[144,128]{1,0:T(1,128)}', space=vmem, size = 0x12000, scoped, tag = 'internal scratch']
  %s0 = inlined_call_operand.hbm [shape: f32[8,32], index: 0, kind: input, shape index: {}]
  %s1 = inlined_call_operand.hbm [shape: f32[32,64], index: 1, kind: input, shape index: {}]
  %s2 = inlined_call_operand.vmem [shape: f32[1,64], index: 2, kind: input, shape index: {}]
  %s3 = inlined_call_operand.hbm [shape: f32[8,64], index: 3, kind: output, shape index: {}]
  %s4 = sld [smem:[#allocation0]]
  $region30: #{fclayer_forward.1} parent=0
    _
  %s6 = ssub.s32 1, %s4
  %s7 = scalar_select 0, %s6, %s4
  $region1: #{fclayer_forward.1} parent=0
    #allocation2 [shape = 'u8[4096]{0}', space=vmem, size = 0x1000, scoped, tag = 'input window, operand 0, single buffered']
    #allocation3 [shape = 's32[1]{0}', space=sflag, size = 0x4, scoped, tag = 'scoped memory for fclayer_forward.1']
    #allocation4 [shape = 's32[1]{0}', space=sflag, size = 0x4, scoped, tag = 'scoped memory for fclayer_forward.1']
    #allocation5 [shape = 'u8[16384]{0}', space=vmem, size = 0x4000, scoped, tag = 'input window, operand 1, single buffered']
    #allocation6 [shape = 's32[1]{0}', space=sflag, size = 0x4, scoped, tag = 'scoped memory for fclayer_forward.1']
    #allocation7 [shape = 'u8[4096]{0}', space=vmem, size = 0x1000, scoped, tag = 'output window, operand 0, single buffered']
    %8 = vsyncpa [#allocation3], 0
    %9 = vsyncpa [#allocation6], 0
    %10 = vsyncpa [#allocation4], 0
    // Predicated region
    $region2: #{fclayer_forward.1} parent=1 // pred_check
      _
    $region3: #{fclayer_forward.1} parent=1 // pred_check_branch
      %12 = sbr.rel (0) target = $region5
    $region4: #{fclayer_forward.1} parent=1 // pred_region
      %s14 = ssub.s32 128, 128
      %15 = vsyncadd [#allocation3], %s14
      %s17 = sshll.u32 [#allocation2], 4
      %s18 = int_to_ptr.vmem [resolvable:$true] %s17
      %20 = dma.hbm_to_vmem [thread:$0]  %s0, 128, %s18, [#allocation3]
    $region5: #{fclayer_forward.1} parent=1 // pred_fallthru
      _
    // Predicated region
    $region6: #{fclayer_forward.1} parent=1 // pred_check
      _
    $region7: #{fclayer_forward.1} parent=1 // pred_check_branch
      %22 = sbr.rel (0) target = $region9
    $region8: #{fclayer_forward.1} parent=1 // pred_region
      %s24 = ssub.s32 512, 512
      %25 = vsyncadd [#allocation6], %s24
      %s26 = sshll.u32 [#allocation5], 4
      %s27 = int_to_ptr.vmem [resolvable:$true] %s26
      %32 = dma.hbm_to_vmem [thread:$0]  %s1, 512, %s27, [#allocation6], 128, 128, 8
    $region9: #{fclayer_forward.1} parent=1 // pred_fallthru
      _
    // Predicated region
    $region10: #{fclayer_forward.1} parent=1 // pred_check
      _
    $region11: #{fclayer_forward.1} parent=1 // pred_check_branch
      %34 = sbr.rel (0) target = $region13
    $region12: #{fclayer_forward.1} parent=1 // pred_region
      _
    $region13: #{fclayer_forward.1} parent=1 // pred_fallthru
      _
    // Predicated region
    $region14: #{fclayer_forward.1} parent=1 // pred_check
      _
    $region15: #{fclayer_forward.1} parent=1 // pred_check_branch
      %36 = sbr.rel (0) target = $region17
    $region16: #{fclayer_forward.1} parent=1 // pred_region
      %37 = dma.done [#allocation3], 128
    $region17: #{fclayer_forward.1} parent=1 // pred_fallthru
      _
    // Predicated region
    $region18: #{fclayer_forward.1} parent=1 // pred_check
      _
    $region19: #{fclayer_forward.1} parent=1 // pred_check_branch
      %39 = sbr.rel (0) target = $region21
    $region20: #{fclayer_forward.1} parent=1 // pred_region
      %40 = dma.done [#allocation6], 512
    $region21: #{fclayer_forward.1} parent=1 // pred_fallthru
      _
    %v41 = vld [vmem:[#allocation2] sm:$0xff]
    %v42 = vld [vmem:[#allocation5] sm:$0xff]
    %v43 = vld [vmem:[#allocation5 + $0x8] sm:$0xff]
    %v44 = vld [vmem:[#allocation5 + $0x10] sm:$0xff]
    %v45 = vld [vmem:[#allocation5 + $0x18] sm:$0xff]
    %v46 = vld [vmem:[%s2] sm:$0x1]
    %v48 = vlaneseq
    %v49 = vshrl.u32 %v48, 7
    %v50 = vsub.s32 0, %v49
    %v51 = vrot.slane %v46, %v50
    %vm53 = vcmask 261120
    %v55 = vsel %vm53, %v41, 0
    %57 = vmatprep.subr.mxu0 0.0
    %58 = vmatpush1.msra.mxu0 0.0
    %59 = vmatprep.subr.mxu0 0.0
    %60 = vmatpush1.msra.mxu0 0.0
    %61 = vmatprep.subr.mxu0 0.0
    %62 = vmatpush1.msra.mxu0 0.0
    %63 = vmatprep.subr.mxu0 0.0
    %64 = vmatpush1.msra.mxu0 0.0
    %65 = vmatprep.subr.mxu0 0.0
    %66 = vmatpush1.msra.mxu0 0.0
    %67 = vmatprep.subr.mxu0 0.0
    %68 = vmatpush1.msra.mxu0 0.0
    %69 = vmatprep.subr.mxu0 0.0
    %70 = vmatpush1.msra.mxu0 0.0
    %71 = vmatprep.subr.mxu0 0.0
    %72 = vmatpush1.msra.mxu0 0.0
    %73 = vmatprep.subr.mxu0 0.0
    %74 = vmatpush1.msra.mxu0 0.0
    %75 = vmatprep.subr.mxu0 0.0
    %76 = vmatpush1.msra.mxu0 0.0
    %77 = vmatprep.subr.mxu0 0.0
    %78 = vmatpush1.msra.mxu0 0.0
    %79 = vmatprep.subr.mxu0 0.0
    %80 = vmatpush1.msra.mxu0 0.0
    %81 = vmatprep.subr.mxu0 0.0
    %82 = vmatpush1.msra.mxu0 %v45
    %83 = vmatprep.subr.mxu0 0.0
    %84 = vmatpush1.msra.mxu0 %v44
    %85 = vmatprep.subr.mxu0 0.0
    %86 = vmatpush1.msra.mxu0 %v43
    %87 = vmatprep.subr.mxu0 0.0
    %88 = vmatpush1.msra.mxu0 %v42
    %89 = vmatprep.subr.mxu0 0.0
    %90 = vmatpush2.msra.mxu0 0.0
    %91 = vmatprep.subr.mxu0 0.0
    %92 = vmatpush2.msra.mxu0 0.0
    %93 = vmatprep.subr.mxu0 0.0
    %94 = vmatpush2.msra.mxu0 0.0
    %95 = vmatprep.subr.mxu0 0.0
    %96 = vmatpush2.msra.mxu0 0.0
    %97 = vmatprep.subr.mxu0 0.0
    %98 = vmatpush2.msra.mxu0 0.0
    %99 = vmatprep.subr.mxu0 0.0
    %100 = vmatpush2.msra.mxu0 0.0
    %101 = vmatprep.subr.mxu0 0.0
    %102 = vmatpush2.msra.mxu0 0.0
    %103 = vmatprep.subr.mxu0 0.0
    %104 = vmatpush2.msra.mxu0 0.0
    %105 = vmatprep.subr.mxu0 0.0
    %106 = vmatpush2.msra.mxu0 0.0
    %107 = vmatprep.subr.mxu0 0.0
    %108 = vmatpush2.msra.mxu0 0.0
    %109 = vmatprep.subr.mxu0 0.0
    %110 = vmatpush2.msra.mxu0 0.0
    %111 = vmatprep.subr.mxu0 0.0
    %112 = vmatpush2.msra.mxu0 0.0
    %113 = vmatprep.subr.mxu0 0.0
    %114 = vmatpush2.msra.mxu0 0.0
    %115 = vmatprep.subr.mxu0 0.0
    %116 = vmatpush2.msra.mxu0 0.0
    %117 = vmatprep.subr.mxu0 0.0
    %118 = vmatpush2.msra.mxu0 0.0
    %119 = vmatprep.subr.mxu0 0.0
    %120 = vmatpush2.msra.mxu0 0.0
    %121 = vmatprep.mubr.f32.mxu0 0.0
    %122 = vmatmul.mubr.f32.gmra.mxu0 %v55
    %v123 = vpop.f32.mrf.mxu0
    %v124 = vadd.f32 %v51, %v123
    %v125 = vpop.f32.mrf.mxu0
    %126 = vdwg.mxu0
    %v127 = vmul.f32 %v124, 0.2
    %v128 = vmax.f32 %v124, %v127
    %129 = vst [vmem:[#allocation7] sm:$0xff] %v128
    // Predicated region
    $region22: #{fclayer_forward.1} parent=1 // pred_check
      _
    $region23: #{fclayer_forward.1} parent=1 // pred_check_branch
      %131 = sbr.rel (0) target = $region25
    $region24: #{fclayer_forward.1} parent=1 // pred_region
      %s133 = ssub.s32 128, 128
      %134 = vsyncadd [#allocation4], %s133
      %s136 = sshll.u32 [#allocation7], 4
      %s137 = int_to_ptr.vmem [resolvable:$true] %s136
      %139 = dma.vmem_to_hbm [thread:$0]  %s137, 128, %s3, [#allocation4]
    $region25: #{fclayer_forward.1} parent=1 // pred_fallthru
      _
    // Predicated region
    $region26: #{fclayer_forward.1} parent=1 // pred_check
      _
    $region27: #{fclayer_forward.1} parent=1 // pred_check_branch
      %141 = sbr.rel (0) target = $region29
    $region28: #{fclayer_forward.1} parent=1 // pred_region
      %142 = dma.done [#allocation4], 128
    $region29: #{fclayer_forward.1} parent=1 // pred_fallthru
      _
    %143 = vsyncpa [#allocation3], 1
    %144 = vsyncpa [#allocation6], 1
    %145 = vsyncpa [#allocation4], 1

</llo_original>
